<compile_context>
chip_gen: v7x
topology: tpu7x:2x2x1
jax: 0.10.0
libtpu: 0.0.40
codegen_flags: <defaults>
</compile_context>

<pallas_src>
import functools
import math

import numpy as np
import jax
import jax.numpy as jnp
from jax.experimental import pallas as pl
from jax.experimental.pallas import tpu as pltpu


_BLUR_1D = (0.125, 0.375, 0.375, 0.125)   # [1,3,3,1] / 8 ; outer product == [1,3,3,1]^2 / 64
_VMEM_LIMIT = 32 * 1024 * 1024


def _round_up(a, b):
    return (a + b - 1) // b * b


# ----------------------------- Pallas kernels ------------------------------

def _conv_rowtile_kernel(x_ref, w_ref, o_ref, *, th, ow, khs, kws):
    """Stride-1 VALID conv for one (batch, row-tile) grid step.

    x_ref: (1, 1, th+KH-1, WP, Cin)  bf16    (row tile + halo rows)
    w_ref: (KH*KW*Cin, CoutP)        bf16    (im2col-ordered weight, CoutP % 128 == 0)
    o_ref: (1, th, OW, CoutP)        f32     (OW % 8 == 0, CoutP % 128 == 0)
    """
    wmat = w_ref[...]                                   # (KH*KW*Cin, CoutP)
    coutp = wmat.shape[-1]
    x = x_ref[0, 0]                                     # (th+KH-1, WP, Cin)
    # Full im2col patch for the whole row tile: (th, OW, KH*KW*Cin), built from value
    # slices (no strided-window reshape) + lane concat; ONE MXU dot per tile with
    # M = th*OW and contraction KH*KW*Cin.
    patch = jnp.concatenate(
        [x[a:a + th, b:b + ow, :] for a in range(khs) for b in range(kws)],
        axis=-1)
    kkc = patch.shape[-1]
    acc = jnp.dot(patch.reshape(th * ow, kkc), wmat,
                  preferred_element_type=jnp.float32)   # (th*OW, CoutP)
    o_ref[0] = acc.reshape(th, ow, coutp).astype(o_ref.dtype)


def _blur_rowtile_kernel(x_ref, o_ref, *, th, ow):
    """Separable depthwise 4x4 blur for one (batch, row-tile) grid step.

    x_ref: (1, 1, th+3, WP, C)   o_ref: (1, th, OW, C)
    """
    x = x_ref[0, 0].astype(jnp.float32)            # (th+3, WP, C)
    h = x[:, 0:ow, :] * _BLUR_1D[0]                # horizontal pass
    for kw in range(1, 4):
        h = h + x[:, kw:kw + ow, :] * _BLUR_1D[kw]
    v = h[0:th] * _BLUR_1D[0]                      # vertical pass
    for kh in range(1, 4):
        v = v + h[kh:kh + th] * _BLUR_1D[kh]
    o_ref[0] = v.astype(o_ref.dtype)


# ----------------------------- kernel wrappers ------------------------------

def conv2d_valid(x, w_hwio, *, row_tile=8):
    """Tiled stride-1 VALID conv.  x: (N,HP,WP,Cin) float, w: (KH,KW,Cin,Cout) HWIO.

    Returns (N, OH, OW, Cout) float32.  Internally: bf16 MXU inputs, f32 accumulation,
    Cout padded to a multiple of 128 (lane-dense stores), OW padded to a multiple of 8
    (clean sublane merge for the per-tile im2col matmul), output rows tiled with halo.
    """
    n, hp, wp, cin = x.shape
    kh, kw, wcin, cout = w_hwio.shape
    assert wcin == cin
    oh, ow = hp - kh + 1, wp - kw + 1

    coutp = _round_up(cout, 128)
    if coutp != cout:
        w_hwio = jnp.pad(w_hwio, ((0, 0), (0, 0), (0, 0), (0, coutp - cout)))
    w_flat = w_hwio.reshape(kh * kw * cin, coutp).astype(jnp.bfloat16)

    owp = _round_up(ow, 8)
    wp_need = owp + kw - 1

    th = min(row_tile, oh)
    nt = pl.cdiv(oh, th)
    ohp = nt * th
    hp_need = ohp + kh - 1

    xb = x.astype(jnp.bfloat16)
    pad_h = max(hp_need - hp, 0)
    pad_w = max(wp_need - wp, 0)
    if pad_h or pad_w:
        xb = jnp.pad(xb, ((0, 0), (0, pad_h), (0, pad_w), (0, 0)))
    wp2 = xb.shape[2]
    # Overlapping row tiles (halo = KH-1 rows) built once wrapper-side; keeps BlockSpecs
    # plain/Blocked so the pipeline double-buffers them.  Overhead ~ (th+KH-1)/th.
    x_tiles = jnp.stack([xb[:, t * th: t * th + th + kh - 1] for t in range(nt)], axis=1)

    kernel = functools.partial(_conv_rowtile_kernel, th=th, ow=owp, khs=kh, kws=kw)
    out = pl.pallas_call(
        kernel,
        out_shape=jax.ShapeDtypeStruct((n, ohp, owp, coutp), jnp.float32),
        grid=(n, nt),
        in_specs=[
            pl.BlockSpec((1, 1, th + kh - 1, wp2, cin), lambda b, t: (b, t, 0, 0, 0)),
            pl.BlockSpec((kh * kw * cin, coutp), lambda b, t: (0, 0)),
        ],
        out_specs=pl.BlockSpec((1, th, owp, coutp), lambda b, t: (b, t, 0, 0)),
        compiler_params=pltpu.CompilerParams(
            dimension_semantics=("parallel", "parallel"),
            vmem_limit_bytes=_VMEM_LIMIT),
    )(x_tiles, w_flat)
    return out[:, :oh, :ow, :cout]


def blur(x, pad, *, row_tile=8):
    """Separable depthwise 4x4 blur.  x: (N,H,W,C) NHWC, pad = (l, r, t, b) torch order."""
    l, r, t, b = pad
    xp = jnp.pad(x, ((0, 0), (t, b), (l, r), (0, 0)))
    n, hp, wp, c = xp.shape
    oh, ow = hp - 3, wp - 3

    th = min(row_tile, oh)
    nt = pl.cdiv(oh, th)
    oh_pad = nt * th
    hp_need = oh_pad + 3
    if hp_need > hp:
        xp = jnp.pad(xp, ((0, 0), (0, hp_need - hp), (0, 0), (0, 0)))
    x_tiles = jnp.stack([xp[:, i * th: i * th + th + 3] for i in range(nt)], axis=1)

    kernel = functools.partial(_blur_rowtile_kernel, th=th, ow=ow)
    out = pl.pallas_call(
        kernel,
        out_shape=jax.ShapeDtypeStruct((n, oh_pad, ow, c), x.dtype),
        grid=(n, nt),
        in_specs=[pl.BlockSpec((1, 1, th + 3, wp, c), lambda bi, ti: (bi, ti, 0, 0, 0))],
        out_specs=pl.BlockSpec((1, th, ow, c), lambda bi, ti: (bi, ti, 0, 0)),
        compiler_params=pltpu.CompilerParams(
            dimension_semantics=("parallel", "parallel"),
            vmem_limit_bytes=_VMEM_LIMIT),
    )(x_tiles)
    return out[:, :oh]


# ----------------------------- GeneratorConv2d forward ------------------------------

def generator_conv2d(x_nchw, weight, kernel_size, upsample=False, downsample=False):
    """Pallas port of GeneratorConv2d.forward.

    x_nchw: (B, Cin, H, W) float32 (PyTorch NCHW)
    weight: (1, Cout, Cin, K, K)   (the nn.Parameter)
    Returns NCHW output (B, Cout, H', W').
    """
    bsz, cin, h, w = x_nchw.shape
    k = kernel_size
    scale = 1.0 / math.sqrt(cin * k * k)
    ws = weight[0] * scale                       # (Cout, Cin, K, K) OIHW
    cout = ws.shape[0]
    w_hwio = jnp.transpose(ws, (2, 3, 1, 0))     # (K, K, Cin, Cout)
    x = jnp.transpose(x_nchw, (0, 2, 3, 1))      # NHWC

    # The reference repeats the *same* weight for every batch group, so the grouped
    # conv is exactly a per-sample conv with the shared (scaled) weight.
    if upsample:
        # 4-phase sub-pixel decomposition of conv_transpose2d(stride=2, pad=0):
        # one stride-1 conv with a (k2, k2, Cin, 4*Cout) kernel on the original input
        # + depth-to-space.  No zero-dilated input / no flipped-kernel pad dance.
        k2 = (k + 1) // 2
        rows = []
        for r in range(k2):
            cols = []
            for c in range(k2):
                phases = []
                for py in range(2):
                    for px in range(2):
                        a = py + 2 * (k2 - 1 - r)
                        b = px + 2 * (k2 - 1 - c)
                        if a < k and b < k:
                            phases.append(w_hwio[a, b])                      # (Cin, Cout)
                        else:
                            phases.append(jnp.zeros((cin, cout), w_hwio.dtype))
                cols.append(jnp.concatenate(phases, axis=-1))                # (Cin, 4*Cout)
            rows.append(jnp.stack(cols, axis=0))
        w_sub = jnp.stack(rows, axis=0)                                      # (k2,k2,Cin,4*Cout)

        xpad = jnp.pad(x, ((0, 0), (k2 - 1, 1), (k2 - 1, 1), (0, 0)))
        y4 = conv2d_valid(xpad, w_sub)                                       # (B, H+1, W+1, 4*Cout)
        m_h, m_w = y4.shape[1], y4.shape[2]
        y = y4.reshape(bsz, m_h, m_w, 2, 2, cout)
        y = jnp.transpose(y, (0, 1, 3, 2, 4, 5)).reshape(bsz, 2 * m_h, 2 * m_w, cout)
        ho, wo = 2 * (h - 1) + k, 2 * (w - 1) + k     # conv_transpose2d output size
        y = y[:, :ho, :wo]
        blur_pad = (1, 1, 1, 1) if k == 3 else (0, 1, 0, 1)
        out = blur(y, blur_pad)
    elif downsample:
        blur_pad = (2, 2, 2, 2) if k == 3 else (2, 3, 2, 3)
        xb = blur(x, blur_pad)
        # stride-2 conv == stride-1 conv over space-to-depth input with a ceil(K/2)^2
        # kernel on 4*Cin channels (larger MXU contraction, no strided loads).
        nb, hb, wb, _ = xb.shape
        k2 = (k + 1) // 2
        oh = (hb - k) // 2 + 1
        ow = (wb - k) // 2 + 1
        hp = max(2 * (oh + k2 - 1), 2 * ((hb + 1) // 2))
        wp = max(2 * (ow + k2 - 1), 2 * ((wb + 1) // 2))
        xb = jnp.pad(xb, ((0, 0), (0, hp - hb), (0, wp - wb), (0, 0)))
        xs = xb.reshape(nb, hp // 2, 2, wp // 2, 2, cin)
        xs = jnp.transpose(xs, (0, 1, 3, 2, 4, 5)).reshape(nb, hp // 2, wp // 2, 4 * cin)
        w_s2d = jnp.zeros((k2, k2, 2, 2, cin, cout), w_hwio.dtype)
        for a in range(k):
            for b in range(k):
                w_s2d = w_s2d.at[a // 2, b // 2, a % 2, b % 2].set(w_hwio[a, b])
        w_s2d = w_s2d.reshape(k2, k2, 4 * cin, cout)
        out = conv2d_valid(xs, w_s2d)[:, :oh, :ow]
    else:
        pad = (k - 1) // 2
        xpad = jnp.pad(x, ((0, 0), (pad, pad), (pad, pad), (0, 0)))
        out = conv2d_valid(xpad, w_hwio)
    return jnp.transpose(out, (0, 3, 1, 2))


# ----------------------------- pure-JAX reference ------------------------------

def _ref_blur_nchw(x, pad):
    l, r, t, b = pad
    c = x.shape[1]
    k1 = np.array([1.0, 3.0, 3.0, 1.0], dtype=np.float64)
    k2 = np.outer(k1, k1)
    k2 = (k2 / k2.sum()).astype(np.float32)
    kern = jnp.tile(jnp.asarray(k2)[None, None], (c, 1, 1, 1))  # (C,1,4,4)
    return jax.lax.conv_general_dilated(
        x, kern, window_strides=(1, 1), padding=[(t, b), (l, r)],
        dimension_numbers=("NCHW", "OIHW", "NCHW"), feature_group_count=c,
        precision=jax.lax.Precision.HIGHEST)


def _ref_forward(x, weight, k, upsample=False, downsample=False):
    b, cin, h, w = x.shape
    scale = 1.0 / math.sqrt(cin * k * k)
    ws = weight[0] * scale
    p = (k - 1) // 2
    dn = ("NCHW", "OIHW", "NCHW")
    if upsample:
        w_eq = jnp.flip(ws, axis=(2, 3))
        out = jax.lax.conv_general_dilated(
            x, w_eq, window_strides=(1, 1), padding=[(k - 1, k - 1)] * 2,
            lhs_dilation=(2, 2), dimension_numbers=dn,
            precision=jax.lax.Precision.HIGHEST)
        return _ref_blur_nchw(out, (1, 1, 1, 1) if k == 3 else (0, 1, 0, 1))
    if downsample:
        xb = _ref_blur_nchw(x, (2, 2, 2, 2) if k == 3 else (2, 3, 2, 3))
        return jax.lax.conv_general_dilated(
            xb, ws, window_strides=(2, 2), padding=[(0, 0)] * 2,
            dimension_numbers=dn, precision=jax.lax.Precision.HIGHEST)
    return jax.lax.conv_general_dilated(
        x, ws, window_strides=(1, 1), padding=[(p, p)] * 2,
        dimension_numbers=dn, precision=jax.lax.Precision.HIGHEST)


# ----------------------------- main ------------------------------

if __name__ == "__main__":
    B, CIN, COUT, H, W, K = 2, 4, 8, 16, 16, 3
    key = jax.random.PRNGKey(0)
    kx, kwt = jax.random.split(key)
    x = jax.random.normal(kx, (B, CIN, H, W), dtype=jnp.float32)
    weight = jax.random.normal(kwt, (1, COUT, CIN, K, K), dtype=jnp.float32)

    out_plain = jax.block_until_ready(generator_conv2d(x, weight, K))
    out_down = jax.block_until_ready(generator_conv2d(x, weight, K, downsample=True))
    out_up = jax.block_until_ready(generator_conv2d(x, weight, K, upsample=True))

    assert out_plain.shape == (B, COUT, H, W), out_plain.shape
    assert out_down.shape == (B, COUT, H // 2, W // 2), out_down.shape
    assert out_up.shape == (B, COUT, 2 * H, 2 * W), out_up.shape

    ref_plain = _ref_forward(x, weight, K)
    ref_down = _ref_forward(x, weight, K, downsample=True)
    ref_up = _ref_forward(x, weight, K, upsample=True)

    # bf16 MXU inputs + f32 accumulation -> slightly looser tolerance than pure f32.
    for got, ref, name in ((out_plain, ref_plain, "plain"),
                           (out_down, ref_down, "down"),
                           (out_up, ref_up, "up")):
        assert np.allclose(np.asarray(got), np.asarray(ref), atol=2e-2, rtol=2e-2), (
            f"mismatch in {name}: max abs err "
            f"{np.max(np.abs(np.asarray(got) - np.asarray(ref)))}")

    print("KERNEL_OK")
</pallas_src>

<mosaic_0001>
module attributes {stable_mosaic.version = 11 : i64} {
  func.func @_conv_rowtile_kernel(%arg0: i32, %arg1: i32, %arg2: memref<1x1x10x18x4xbf16, #tpu.memory_space<vmem>>, %arg3: memref<36x128xbf16, #tpu.memory_space<vmem>>, %arg4: memref<1x8x16x128xf32, #tpu.memory_space<vmem>>) attributes {dimension_semantics = [#tpu.dimension_semantics<parallel>, #tpu.dimension_semantics<parallel>], iteration_bounds = array<i64: 2, 2>, scalar_prefetch = 0 : i64, scratch_operands = 0 : i64, tpu.core_type = #tpu.core_type<tc>, window_params = [{transform_indices = @transform_0, window_bounds = array<i64: 1, 1, 10, 18, 4>}, {pipeline_mode = #tpu.pipeline_mode<synchronous>, transform_indices = @transform_1, window_bounds = array<i64: 36, 128>}, {transform_indices = @transform_2, window_bounds = array<i64: 1, 8, 16, 128>}]} {
    %c0 = arith.constant 0 : index
    %c0_0 = arith.constant 0 : index
    %0 = vector.load %arg3[%c0, %c0_0] : memref<36x128xbf16, #tpu.memory_space<vmem>>, vector<36x128xbf16>
    %c0_1 = arith.constant 0 : index
    %c0_2 = arith.constant 0 : index
    %c0_3 = arith.constant 0 : index
    %c0_4 = arith.constant 0 : index
    %c0_5 = arith.constant 0 : index
    %1 = vector.load %arg2[%c0_1, %c0_2, %c0_3, %c0_4, %c0_5] : memref<1x1x10x18x4xbf16, #tpu.memory_space<vmem>>, vector<1x1x10x18x4xbf16>
    %2 = vector.shape_cast %1 : vector<1x1x10x18x4xbf16> to vector<10x18x4xbf16>
    %3 = vector.extract_strided_slice %2 {offsets = [0, 0, 0], sizes = [8, 16, 4], strides = [1, 1, 1]} : vector<10x18x4xbf16> to vector<8x16x4xbf16>
    %4 = vector.extract_strided_slice %2 {offsets = [0, 1, 0], sizes = [8, 16, 4], strides = [1, 1, 1]} : vector<10x18x4xbf16> to vector<8x16x4xbf16>
    %5 = vector.extract_strided_slice %2 {offsets = [0, 2, 0], sizes = [8, 16, 4], strides = [1, 1, 1]} : vector<10x18x4xbf16> to vector<8x16x4xbf16>
    %6 = vector.extract_strided_slice %2 {offsets = [1, 0, 0], sizes = [8, 16, 4], strides = [1, 1, 1]} : vector<10x18x4xbf16> to vector<8x16x4xbf16>
    %7 = vector.extract_strided_slice %2 {offsets = [1, 1, 0], sizes = [8, 16, 4], strides = [1, 1, 1]} : vector<10x18x4xbf16> to vector<8x16x4xbf16>
    %8 = vector.extract_strided_slice %2 {offsets = [1, 2, 0], sizes = [8, 16, 4], strides = [1, 1, 1]} : vector<10x18x4xbf16> to vector<8x16x4xbf16>
    %9 = vector.extract_strided_slice %2 {offsets = [2, 0, 0], sizes = [8, 16, 4], strides = [1, 1, 1]} : vector<10x18x4xbf16> to vector<8x16x4xbf16>
    %10 = vector.extract_strided_slice %2 {offsets = [2, 1, 0], sizes = [8, 16, 4], strides = [1, 1, 1]} : vector<10x18x4xbf16> to vector<8x16x4xbf16>
    %11 = vector.extract_strided_slice %2 {offsets = [2, 2, 0], sizes = [8, 16, 4], strides = [1, 1, 1]} : vector<10x18x4xbf16> to vector<8x16x4xbf16>
    %12 = tpu.concatenate %3, %4, %5, %6, %7, %8, %9, %10, %11 in 2 : vector<8x16x4xbf16>, vector<8x16x4xbf16>, vector<8x16x4xbf16>, vector<8x16x4xbf16>, vector<8x16x4xbf16>, vector<8x16x4xbf16>, vector<8x16x4xbf16>, vector<8x16x4xbf16>, vector<8x16x4xbf16> -> vector<8x16x36xbf16>
    %13 = vector.shape_cast %12 : vector<8x16x36xbf16> to vector<128x36xbf16>
    %cst = arith.constant dense<0.000000e+00> : vector<128x128xf32>
    %14 = tpu.matmul %13, %0, %cst {dimension_numbers = #tpu.dot_dimension_numbers<[1], [0], [0], [1], [0, 0, 1, 1], [], []>} : vector<128x36xbf16>, vector<36x128xbf16>, vector<128x128xf32> -> vector<128x128xf32>
    %15 = vector.shape_cast %14 : vector<128x128xf32> to vector<8x16x128xf32>
    %c0_6 = arith.constant 0 : index
    %c0_7 = arith.constant 0 : index
    %c0_8 = arith.constant 0 : index
    %c0_9 = arith.constant 0 : index
    %16 = vector.load %arg4[%c0_6, %c0_7, %c0_8, %c0_9] : memref<1x8x16x128xf32, #tpu.memory_space<vmem>>, vector<1x8x16x128xf32>
    %17 = vector.shape_cast %16 : vector<1x8x16x128xf32> to vector<8x16x128xf32>
    %18 = vector.shape_cast %15 : vector<8x16x128xf32> to vector<1x8x16x128xf32>
    tpu.vector_store %arg4[%c0_6, %c0_7, %c0_8, %c0_9], %18 {strides = array<i32>} : memref<1x8x16x128xf32, #tpu.memory_space<vmem>>, vector<1x8x16x128xf32>,
    return
  }
  func.func @transform_0(%arg0: i32, %arg1: i32) -> (i32, i32, i32, i32, i32) {
    %c0_i32 = arith.constant 0 : i32
    %c0_i32_0 = arith.constant 0 : i32
    %c0_i32_1 = arith.constant 0 : i32
    %c0_i32_2 = arith.constant 0 : i32
    return %arg0, %arg1, %c0_i32, %c0_i32_0, %c0_i32_1 : i32, i32, i32, i32, i32
  }
  func.func @transform_1(%arg0: i32, %arg1: i32) -> (i32, i32) {
    %c0_i32 = arith.constant 0 : i32
    %c0_i32_0 = arith.constant 0 : i32
    %c0_i32_1 = arith.constant 0 : i32
    return %c0_i32, %c0_i32_0 : i32, i32
  }
  func.func @transform_2(%arg0: i32, %arg1: i32) -> (i32, i32, i32, i32) {
    %c0_i32 = arith.constant 0 : i32
    %c0_i32_0 = arith.constant 0 : i32
    %c0_i32_1 = arith.constant 0 : i32
    return %arg0, %arg1, %c0_i32, %c0_i32_0 : i32, i32, i32, i32
  }
}

</mosaic_0001>

<llo_original>
// kernel: tpu_custom_call.1
$region0: #{tpu_custom_call.1}
  #allocation0 [shape = 'u32[]', space=smem, size = 0x4, offset = 0x4, fixed_abs, tag = 'smem constant byte address 0x4 - core index']
  #allocation1 [shape = 'u32[144,128]{1,0:T(1,128)}', space=vmem, size = 0x12000, scoped, tag = 'internal scratch']
  %s0 = inlined_call_operand.vmem [shape: bf16[2,2,10,18,4], index: 0, kind: input, shape index: {}]
  %s1 = inlined_call_operand.vmem [shape: bf16[36,128], index: 1, kind: input, shape index: {}]
  %s2 = inlined_call_operand.hbm [shape: f32[2,16,16,128], index: 2, kind: output, shape index: {}]
  %s3 = sld [smem:[#allocation0]]
  $region41: #{tpu_custom_call.1} parent=0
    _
  %s5 = ssub.s32 1, %s3
  %s6 = scalar_select 0, %s5, %s3
  $region1: #{tpu_custom_call.1} parent=0
    #allocation2 [shape = 'u8[131072]{0}', space=vmem, size = 0x20000, scoped, tag = 'output window, operand 0']
    #allocation3 [shape = 's32[2]{0}', space=sflag, size = 0x8, scoped, tag = 'scoped memory for tpu_custom_call.1']
    %7 = vsyncpa [#allocation3], 0
    %s8 = scalar_lea.sflag [#allocation3], 1
    %9 = vsyncpa %s8, 0
    loop: start=0, step=1, limit=6
    $region2: #{tpu_custom_call.1} parent=1 // loop_pre_header
      _
    $region3: #{tpu_custom_call.1} parent=1 // loop_header
      %s11 = sphi 0, %s15
      %p12 = scmp.ge.s32.totalorder %s11, 6
      %s18 = sphi 0, %s30
      %s19 = sphi 0, %s26
      %s20 = sphi 0, %s18
      %s21 = sphi 0, %s19
      %s22 = sphi 0, %s20
      %s23 = sphi 0, %s21
      %s35 = sphi 0, %s37
      %s38 = sphi 0, %s35
      %s39 = sphi 0, %s38
      %s55 = sphi 0, %s39
      %s59 = sphi 0, %s59
      %s61 = sphi 0, %s59
      %s62 = sphi 0, %s61
      %s76 = sphi 0, %s62
      %s84 = sphi 0, %s86
      %s87 = sphi 0, %s84
      %s88 = sphi 0, %s87
      %s104 = sphi 0, %s88
    $region4: #{tpu_custom_call.1} parent=1 // loop_header_branch
      %14 = sbr.rel (%p12) target = $region8
    $region5: #{tpu_custom_call.1} parent=1 // loop_body
      %s16 = ssub.s32 %s11, 1
      %s17 = ssub.s32 %s11, 2
      %s24 = sadd.s32 1, %s19
      %p25 = scmp.ge.s32.totalorder %s24, 2
      %s26 = scalar_select %p25, 0, %s24
      %s27 = sadd.s32 1, %s18
      %s28 = scalar_select %p25, %s27, %s18
      %p29 = scmp.ge.s32.totalorder %s28, 2
      %s30 = scalar_select %p29, 0, %s28
      %s31 = ssub.s32 %s18, %s30
      %s32 = ssub.s32 %s19, %s26
      %s33 = sor.u32 %s31, %s32
      %p34 = scmp.eq.s32.totalorder %s33, 0
      %s36 = sadd.s32 %s35, 1
      %s37 = scalar_select %p34, %s35, %s36
      %p40 = pneg %p34
      %p41 = scmp.eq.s32.totalorder %s11, 3
      %p42 = por %p40, %p41
      %p43 = scmp.ne.s32.totalorder %s35, %s38
      %p44 = scmp.eq.s32.totalorder %s11, 0
      %p45 = por %p43, %p44
      %p46 = scmp.ne.s32.totalorder %s35, %s38
      %p47 = scmp.eq.s32.totalorder %s16, 3
      %p48 = por %p46, %p47
      %p49 = scmp.ne.s32.totalorder %s38, %s39
      %p50 = scmp.eq.s32.totalorder %s16, 0
      %p51 = por %p49, %p50
      %p52 = scmp.ne.s32.totalorder %s38, %s39
      %p53 = scmp.eq.s32.totalorder %s17, 3
      %p54 = por %p52, %p53
      %p56 = scmp.ne.s32.totalorder %s39, %s55
      %p57 = scmp.eq.s32.totalorder %s17, 0
      %p58 = por %p56, %p57
      %s60 = sadd.s32 %s59, 1
      %p63 = scmp.eq.s32.totalorder %s11, 3
      %p64 = scmp.ne.s32.totalorder %s59, %s61
      %p65 = scmp.eq.s32.totalorder %s11, 0
      %p66 = por %p64, %p65
      %p67 = scmp.ne.s32.totalorder %s59, %s61
      %p68 = scmp.eq.s32.totalorder %s16, 3
      %p69 = por %p67, %p68
      %p70 = scmp.ne.s32.totalorder %s61, %s62
      %p71 = scmp.eq.s32.totalorder %s16, 0
      %p72 = por %p70, %p71
      %p73 = scmp.ne.s32.totalorder %s61, %s62
      %p74 = scmp.eq.s32.totalorder %s17, 3
      %p75 = por %p73, %p74
      %p77 = scmp.ne.s32.totalorder %s62, %s76
      %p78 = scmp.eq.s32.totalorder %s17, 0
      %p79 = por %p77, %p78
      %s80 = ssub.s32 %s18, %s30
      %s81 = ssub.s32 %s19, %s26
      %s82 = sor.u32 %s80, %s81
      %p83 = scmp.eq.s32.totalorder %s82, 0
      %s85 = sadd.s32 %s84, 1
      %s86 = scalar_select %p83, %s84, %s85
      %p89 = pneg %p83
      %p90 = scmp.eq.s32.totalorder %s11, 3
      %p91 = por %p89, %p90
      %p92 = scmp.ne.s32.totalorder %s84, %s87
      %p93 = scmp.eq.s32.totalorder %s11, 0
      %p94 = por %p92, %p93
      %p95 = scmp.ne.s32.totalorder %s84, %s87
      %p96 = scmp.eq.s32.totalorder %s16, 3
      %p97 = por %p95, %p96
      %p98 = scmp.ne.s32.totalorder %s87, %s88
      %p99 = scmp.eq.s32.totalorder %s16, 0
      %p100 = por %p98, %p99
      %p101 = scmp.ne.s32.totalorder %s87, %s88
      %p102 = scmp.eq.s32.totalorder %s17, 3
      %p103 = por %p101, %p102
      %p105 = scmp.ne.s32.totalorder %s88, %s104
      %p106 = scmp.eq.s32.totalorder %s17, 0
      %p107 = por %p105, %p106
      %p108 = scmp.le.s32.totalorder 1, %s11
      %p109 = scmp.lt.s32.totalorder %s11, 5
      %p110 = pnand %p108, %p109
      %p111 = pneg %p110
      // Predicated region
      $region9: #{tpu_custom_call.1} parent=5 // pred_check
        _
      $region10: #{tpu_custom_call.1} parent=5 // pred_check_branch
        %113 = sbr.rel (%p110) target = $region12
      $region11: #{tpu_custom_call.1} parent=5 // pred_region
        %s114 = ssub.s32 %s11, 1
        // Predicated region
        $region13: #{tpu_custom_call.1} parent=11 // pred_check
          %p115 = pneg %p72
        $region14: #{tpu_custom_call.1} parent=11 // pred_check_branch
          %117 = sbr.rel (%p115) target = $region16
        $region15: #{tpu_custom_call.1} parent=11 // pred_region
          _
        $region16: #{tpu_custom_call.1} parent=11 // pred_fallthru
          _
      $region12: #{tpu_custom_call.1} parent=5 // pred_fallthru
        _
      %p118 = scmp.lt.s32.totalorder %s11, 4
      // Predicated region
      $region17: #{tpu_custom_call.1} parent=5 // pred_check
        %p119 = pneg %p118
      $region18: #{tpu_custom_call.1} parent=5 // pred_check_branch
        %121 = sbr.rel (%p119) target = $region20
      $region19: #{tpu_custom_call.1} parent=5 // pred_region
        // Predicated region
        $region21: #{tpu_custom_call.1} parent=19 // pred_check
          %p122 = pneg %p45
        $region22: #{tpu_custom_call.1} parent=19 // pred_check_branch
          %124 = sbr.rel (%p122) target = $region24
        $region23: #{tpu_custom_call.1} parent=19 // pred_region
          %p125 = scmp.lt.s32.totalorder %s18, 1
          %s126 = scalar_select %p125, %s18, 1
          %p127 = scmp.lt.s32.totalorder %s19, 1
          %s128 = scalar_select %p127, %s19, 1
          %s129 = smul.addr %s128, 30
          %s130 = smul.addr %s126, 60
          %s131 = sadd.s32 %s129, %s130
          %s132 = smul.addr %s131, 4
          %s133 = scalar_lea.vmem %s0, %s132
        $region24: #{tpu_custom_call.1} parent=19 // pred_fallthru
          _
      $region20: #{tpu_custom_call.1} parent=5 // pred_fallthru
        _
      %p134 = scmp.le.s32.totalorder 1, %s11
      %p135 = scmp.lt.s32.totalorder %s11, 5
      %p136 = pnand %p134, %p135
      %p137 = pneg %p136
      // Predicated region
      $region25: #{tpu_custom_call.1} parent=5 // pred_check
        _
      $region26: #{tpu_custom_call.1} parent=5 // pred_check_branch
        %139 = sbr.rel (%p136) target = $region28
      $region27: #{tpu_custom_call.1} parent=5 // pred_region
        %s140 = ssub.s32 %s11, 1
        %p141 = scmp.lt.s32.totalorder %s20, 1
        %s142 = scalar_select %p141, %s20, 1
        %p143 = scmp.lt.s32.totalorder %s21, 1
        %s144 = scalar_select %p143, %s21, 1
        %s145 = smul.addr %s144, 30
        %s146 = smul.addr %s142, 60
        %s147 = sadd.s32 %s145, %s146
        %s148 = smul.addr %s147, 4
        %s149 = scalar_lea.vmem %s0, %s148
        %p150 = pneg %p51
        %p151 = pneg %p48
        %p152 = pneg %p72
        %p153 = pneg %p69
        %p154 = pneg %p100
        %p155 = pneg %p97
        %s156 = sand.u32 %s87, 1
        %s157 = scalar_lea.sflag [#allocation3], %s156
        %s158 = sand.u32 %s87, 1
        %s159 = smul.addr %s158, 128
        %s160 = scalar_lea.vmem [#allocation2], %s159
        %p161 = scmp.lt.s32.totalorder %s20, 1
        %s162 = scalar_select %p161, %s20, 1
        %p163 = scmp.lt.s32.totalorder %s21, 1
        %s164 = scalar_select %p163, %s21, 1
        %s165 = smul.addr %s164, 30
        %s166 = smul.addr %s162, 60
        %s167 = sadd.s32 %s165, %s166
        %s168 = smul.addr %s167, 4
        %s169 = scalar_lea.vmem %s0, %s168
        %s170 = smul.u32 8, %s21
        %v172 = vld [vmem:[%s1] sm:$0xf]
        %v173 = vld [vmem:[%s1 + $0x4] sm:$0xf]
        %v174 = vld [vmem:[%s1 + $0x8] sm:$0xf]
        %v175 = vld [vmem:[%s1 + $0xc] sm:$0xf]
        %v176 = vld [vmem:[%s1 + $0x10] sm:$0x3]
        %v177 = vld [vmem:[%s169] sm:$0xf]
        %v178 = vld [vmem:[%s169 + $0x4] sm:$0xf]
        %v179 = vld [vmem:[%s169 + $0x8] sm:$0x1]
        %v180 = vld [vmem:[%s169 + $0xc] sm:$0xf]
        %v181 = vld [vmem:[%s169 + $0x10] sm:$0xf]
        %v182 = vld [vmem:[%s169 + $0x14] sm:$0x1]
        %v183 = vld [vmem:[%s169 + $0x18] sm:$0xf]
        %v184 = vld [vmem:[%s169 + $0x1c] sm:$0xf]
        %v185 = vld [vmem:[%s169 + $0x20] sm:$0x1]
        %v186 = vld [vmem:[%s169 + $0x24] sm:$0xf]
        %v187 = vld [vmem:[%s169 + $0x28] sm:$0xf]
        %v188 = vld [vmem:[%s169 + $0x2c] sm:$0x1]
        %v189 = vld [vmem:[%s169 + $0x30] sm:$0xf]
        %v190 = vld [vmem:[%s169 + $0x34] sm:$0xf]
        %v191 = vld [vmem:[%s169 + $0x38] sm:$0x1]
        %v192 = vld [vmem:[%s169 + $0x3c] sm:$0xf]
        %v193 = vld [vmem:[%s169 + $0x40] sm:$0xf]
        %v194 = vld [vmem:[%s169 + $0x44] sm:$0x1]
        %v195 = vld [vmem:[%s169 + $0x48] sm:$0xf]
        %v196 = vld [vmem:[%s169 + $0x4c] sm:$0xf]
        %v197 = vld [vmem:[%s169 + $0x50] sm:$0x1]
        %v198 = vld [vmem:[%s169 + $0x54] sm:$0xf]
        %v199 = vld [vmem:[%s169 + $0x58] sm:$0xf]
        %v200 = vld [vmem:[%s169 + $0x5c] sm:$0x1]
        %v201 = vld [vmem:[%s169 + $0x60] sm:$0xf]
        %v202 = vld [vmem:[%s169 + $0x64] sm:$0xf]
        %v203 = vld [vmem:[%s169 + $0x68] sm:$0x1]
        %v204 = vld [vmem:[%s169 + $0x6c] sm:$0xf]
        %v205 = vld [vmem:[%s169 + $0x70] sm:$0xf]
        %v206 = vld [vmem:[%s169 + $0x74] sm:$0x1]
        %v223 = vunpack.c.l.b16 %v177
        %v224 = vunpack.c.l.b16 %v178
        %v225 = vunpack.c.l.b16 %v180
        %v226 = vunpack.c.l.b16 %v181
        %v227 = vunpack.c.l.b16 %v183
        %v228 = vunpack.c.l.b16 %v184
        %v229 = vunpack.c.l.b16 %v186
        %v230 = vunpack.c.l.b16 %v187
        %v231 = vunpack.c.l.b16 %v189
        %v232 = vunpack.c.l.b16 %v190
        %v233 = vunpack.c.l.b16 %v192
        %v234 = vunpack.c.l.b16 %v193
        %v235 = vunpack.c.l.b16 %v195
        %v236 = vunpack.c.l.b16 %v196
        %v237 = vunpack.c.l.b16 %v198
        %v238 = vunpack.c.l.b16 %v199
        %v239 = vpack.c.b16 %v224, %v223
        %v240 = vpack.c.b16 %v226, %v225
        %v241 = vpack.c.b16 %v228, %v227
        %v242 = vpack.c.b16 %v230, %v229
        %v243 = vpack.c.b16 %v232, %v231
        %v244 = vpack.c.b16 %v234, %v233
        %v245 = vpack.c.b16 %v236, %v235
        %v246 = vpack.c.b16 %v238, %v237
        %v255 = vunpack.c.l.b16 %v179
        %v256 = vunpack.c.l.b16 %v182
        %v257 = vunpack.c.l.b16 %v185
        %v258 = vunpack.c.l.b16 %v188
        %v259 = vunpack.c.l.b16 %v191
        %v260 = vunpack.c.l.b16 %v194
        %v261 = vunpack.c.l.b16 %v197
        %v262 = vunpack.c.l.b16 %v200
        %v263 = vpack.c.b16 %v255, %v255
        %v264 = vpack.c.b16 %v256, %v256
        %v265 = vpack.c.b16 %v257, %v257
        %v266 = vpack.c.b16 %v258, %v258
        %v267 = vpack.c.b16 %v259, %v259
        %v268 = vpack.c.b16 %v260, %v260
        %v269 = vpack.c.b16 %v261, %v261
        %v270 = vpack.c.b16 %v262, %v262
        %vm271 = vsmask.f32 7424
        %v273 = vshrl.u32 %v239, 16
        %v275 = vshll.u32 %v239, 16
        %v277 = vrot.slane %v275, 1
        %v278 = vor.u32 %v273, %v277
        %v280 = vshll.u32 %v263, 16
        %v282 = vrot.slane %v280, 1
        %v283 = vsel %vm271, %v278, %v282
        %v285 = vshrl.u32 %v240, 16
        %v287 = vshll.u32 %v240, 16
        %v289 = vrot.slane %v287, 1
        %v290 = vor.u32 %v285, %v289
        %v292 = vshll.u32 %v264, 16
        %v294 = vrot.slane %v292, 1
        %v295 = vsel %vm271, %v290, %v294
        %v297 = vshrl.u32 %v241, 16
        %v299 = vshll.u32 %v241, 16
        %v301 = vrot.slane %v299, 1
        %v302 = vor.u32 %v297, %v301
        %v304 = vshll.u32 %v265, 16
        %v306 = vrot.slane %v304, 1
        %v307 = vsel %vm271, %v302, %v306
        %v309 = vshrl.u32 %v242, 16
        %v311 = vshll.u32 %v242, 16
        %v313 = vrot.slane %v311, 1
        %v314 = vor.u32 %v309, %v313
        %v316 = vshll.u32 %v266, 16
        %v318 = vrot.slane %v316, 1
        %v319 = vsel %vm271, %v314, %v318
        %v321 = vshrl.u32 %v243, 16
        %v323 = vshll.u32 %v243, 16
        %v325 = vrot.slane %v323, 1
        %v326 = vor.u32 %v321, %v325
        %v328 = vshll.u32 %v267, 16
        %v330 = vrot.slane %v328, 1
        %v331 = vsel %vm271, %v326, %v330
        %v333 = vshrl.u32 %v244, 16
        %v335 = vshll.u32 %v244, 16
        %v337 = vrot.slane %v335, 1
        %v338 = vor.u32 %v333, %v337
        %v340 = vshll.u32 %v268, 16
        %v342 = vrot.slane %v340, 1
        %v343 = vsel %vm271, %v338, %v342
        %v345 = vshrl.u32 %v245, 16
        %v347 = vshll.u32 %v245, 16
        %v349 = vrot.slane %v347, 1
        %v350 = vor.u32 %v345, %v349
        %v352 = vshll.u32 %v269, 16
        %v354 = vrot.slane %v352, 1
        %v355 = vsel %vm271, %v350, %v354
        %v357 = vshrl.u32 %v246, 16
        %v359 = vshll.u32 %v246, 16
        %v361 = vrot.slane %v359, 1
        %v362 = vor.u32 %v357, %v361
        %v364 = vshll.u32 %v270, 16
        %v366 = vrot.slane %v364, 1
        %v367 = vsel %vm271, %v362, %v366
        %368 = vrot.lane.b32.xlu0 %v283, 4
        %v369 = vpop.permute.xlu0 %368
        %370 = vrot.lane.b32.xlu0 %v295, 4
        %v371 = vpop.permute.xlu0 %370
        %372 = vrot.lane.b32.xlu0 %v307, 4
        %v373 = vpop.permute.xlu0 %372
        %374 = vrot.lane.b32.xlu0 %v319, 4
        %v375 = vpop.permute.xlu0 %374
        %376 = vrot.lane.b32.xlu0 %v331, 4
        %v377 = vpop.permute.xlu0 %376
        %378 = vrot.lane.b32.xlu0 %v343, 4
        %v379 = vpop.permute.xlu0 %378
        %380 = vrot.lane.b32.xlu0 %v355, 4
        %v381 = vpop.permute.xlu0 %380
        %382 = vrot.lane.b32.xlu0 %v367, 4
        %v383 = vpop.permute.xlu0 %382
        %vm384 = vcmask 1046528
        %v385 = vrot.slane %v239, 1
        %v386 = vrot.slane %v263, 1
        %v387 = vsel %vm384, %v385, %v386
        %v388 = vrot.slane %v240, 1
        %v389 = vrot.slane %v264, 1
        %v390 = vsel %vm384, %v388, %v389
        %v391 = vrot.slane %v241, 1
        %v392 = vrot.slane %v265, 1
        %v393 = vsel %vm384, %v391, %v392
        %v394 = vrot.slane %v242, 1
        %v395 = vrot.slane %v266, 1
        %v396 = vsel %vm384, %v394, %v395
        %v397 = vrot.slane %v243, 1
        %v398 = vrot.slane %v267, 1
        %v399 = vsel %vm384, %v397, %v398
        %v400 = vrot.slane %v244, 1
        %v401 = vrot.slane %v268, 1
        %v402 = vsel %vm384, %v400, %v401
        %v403 = vrot.slane %v245, 1
        %v404 = vrot.slane %v269, 1
        %v405 = vsel %vm384, %v403, %v404
        %v406 = vrot.slane %v246, 1
        %v407 = vrot.slane %v270, 1
        %v408 = vsel %vm384, %v406, %v407
        %409 = vrot.lane.b32.xlu0 %v387, 8
        %v410 = vpop.permute.xlu0 %409
        %411 = vrot.lane.b32.xlu0 %v390, 8
        %v412 = vpop.permute.xlu0 %411
        %413 = vrot.lane.b32.xlu0 %v393, 8
        %v414 = vpop.permute.xlu0 %413
        %415 = vrot.lane.b32.xlu0 %v396, 8
        %v416 = vpop.permute.xlu0 %415
        %417 = vrot.lane.b32.xlu0 %v399, 8
        %v418 = vpop.permute.xlu0 %417
        %419 = vrot.lane.b32.xlu0 %v402, 8
        %v420 = vpop.permute.xlu0 %419
        %421 = vrot.lane.b32.xlu0 %v405, 8
        %v422 = vpop.permute.xlu0 %421
        %423 = vrot.lane.b32.xlu0 %v408, 8
        %v424 = vpop.permute.xlu0 %423
        %v427 = vunpack.c.l.b16 %v201
        %v428 = vunpack.c.l.b16 %v202
        %v429 = vpack.c.b16 %v428, %v427
        %430 = vrot.lane.b32.xlu0 %v240, 12
        %v431 = vpop.permute.xlu0 %430
        %432 = vrot.lane.b32.xlu0 %v241, 12
        %v433 = vpop.permute.xlu0 %432
        %434 = vrot.lane.b32.xlu0 %v242, 12
        %v435 = vpop.permute.xlu0 %434
        %436 = vrot.lane.b32.xlu0 %v243, 12
        %v437 = vpop.permute.xlu0 %436
        %438 = vrot.lane.b32.xlu0 %v244, 12
        %v439 = vpop.permute.xlu0 %438
        %440 = vrot.lane.b32.xlu0 %v245, 12
        %v441 = vpop.permute.xlu0 %440
        %442 = vrot.lane.b32.xlu0 %v246, 12
        %v443 = vpop.permute.xlu0 %442
        %444 = vrot.lane.b32.xlu0 %v429, 12
        %v445 = vpop.permute.xlu0 %444
        %v447 = vunpack.c.l.b16 %v203
        %v448 = vpack.c.b16 %v447, %v447
        %v450 = vshrl.u32 %v429, 16
        %v452 = vshll.u32 %v429, 16
        %v454 = vrot.slane %v452, 1
        %v455 = vor.u32 %v450, %v454
        %v457 = vshll.u32 %v448, 16
        %v459 = vrot.slane %v457, 1
        %v460 = vsel %vm271, %v455, %v459
        %461 = vrot.lane.b32.xlu0 %v295, 16
        %v462 = vpop.permute.xlu0 %461
        %463 = vrot.lane.b32.xlu0 %v307, 16
        %v464 = vpop.permute.xlu0 %463
        %465 = vrot.lane.b32.xlu0 %v319, 16
        %v466 = vpop.permute.xlu0 %465
        %467 = vrot.lane.b32.xlu0 %v331, 16
        %v468 = vpop.permute.xlu0 %467
        %469 = vrot.lane.b32.xlu0 %v343, 16
        %v470 = vpop.permute.xlu0 %469
        %471 = vrot.lane.b32.xlu0 %v355, 16
        %v472 = vpop.permute.xlu0 %471
        %473 = vrot.lane.b32.xlu0 %v367, 16
        %v474 = vpop.permute.xlu0 %473
        %475 = vrot.lane.b32.xlu0 %v460, 16
        %v476 = vpop.permute.xlu0 %475
        %v477 = vrot.slane %v429, 1
        %v478 = vrot.slane %v448, 1
        %v479 = vsel %vm384, %v477, %v478
        %480 = vrot.lane.b32.xlu0 %v390, 20
        %v481 = vpop.permute.xlu0 %480
        %482 = vrot.lane.b32.xlu0 %v393, 20
        %v483 = vpop.permute.xlu0 %482
        %484 = vrot.lane.b32.xlu0 %v396, 20
        %v485 = vpop.permute.xlu0 %484
        %486 = vrot.lane.b32.xlu0 %v399, 20
        %v487 = vpop.permute.xlu0 %486
        %488 = vrot.lane.b32.xlu0 %v402, 20
        %v489 = vpop.permute.xlu0 %488
        %490 = vrot.lane.b32.xlu0 %v405, 20
        %v491 = vpop.permute.xlu0 %490
        %492 = vrot.lane.b32.xlu0 %v408, 20
        %v493 = vpop.permute.xlu0 %492
        %494 = vrot.lane.b32.xlu0 %v479, 20
        %v495 = vpop.permute.xlu0 %494
        %v498 = vunpack.c.l.b16 %v204
        %v499 = vunpack.c.l.b16 %v205
        %v500 = vpack.c.b16 %v499, %v498
        %501 = vrot.lane.b32.xlu0 %v241, 24
        %v502 = vpop.permute.xlu0 %501
        %503 = vrot.lane.b32.xlu0 %v242, 24
        %v504 = vpop.permute.xlu0 %503
        %505 = vrot.lane.b32.xlu0 %v243, 24
        %v506 = vpop.permute.xlu0 %505
        %507 = vrot.lane.b32.xlu0 %v244, 24
        %v508 = vpop.permute.xlu0 %507
        %509 = vrot.lane.b32.xlu0 %v245, 24
        %v510 = vpop.permute.xlu0 %509
        %511 = vrot.lane.b32.xlu0 %v246, 24
        %v512 = vpop.permute.xlu0 %511
        %513 = vrot.lane.b32.xlu0 %v429, 24
        %v514 = vpop.permute.xlu0 %513
        %515 = vrot.lane.b32.xlu0 %v500, 24
        %v516 = vpop.permute.xlu0 %515
        %v518 = vunpack.c.l.b16 %v206
        %v519 = vpack.c.b16 %v518, %v518
        %v521 = vshrl.u32 %v500, 16
        %v523 = vshll.u32 %v500, 16
        %v525 = vrot.slane %v523, 1
        %v526 = vor.u32 %v521, %v525
        %v528 = vshll.u32 %v519, 16
        %v530 = vrot.slane %v528, 1
        %v531 = vsel %vm271, %v526, %v530
        %532 = vrot.lane.b32.xlu0 %v307, 28
        %v533 = vpop.permute.xlu0 %532
        %534 = vrot.lane.b32.xlu0 %v319, 28
        %v535 = vpop.permute.xlu0 %534
        %536 = vrot.lane.b32.xlu0 %v331, 28
        %v537 = vpop.permute.xlu0 %536
        %538 = vrot.lane.b32.xlu0 %v343, 28
        %v539 = vpop.permute.xlu0 %538
        %540 = vrot.lane.b32.xlu0 %v355, 28
        %v541 = vpop.permute.xlu0 %540
        %542 = vrot.lane.b32.xlu0 %v367, 28
        %v543 = vpop.permute.xlu0 %542
        %544 = vrot.lane.b32.xlu0 %v460, 28
        %v545 = vpop.permute.xlu0 %544
        %546 = vrot.lane.b32.xlu0 %v531, 28
        %v547 = vpop.permute.xlu0 %546
        %v548 = vrot.slane %v500, 1
        %v549 = vrot.slane %v519, 1
        %v550 = vsel %vm384, %v548, %v549
        %551 = vrot.lane.b32.xlu0 %v393, 32
        %v552 = vpop.permute.xlu0 %551
        %553 = vrot.lane.b32.xlu0 %v396, 32
        %v554 = vpop.permute.xlu0 %553
        %555 = vrot.lane.b32.xlu0 %v399, 32
        %v556 = vpop.permute.xlu0 %555
        %557 = vrot.lane.b32.xlu0 %v402, 32
        %v558 = vpop.permute.xlu0 %557
        %559 = vrot.lane.b32.xlu0 %v405, 32
        %v560 = vpop.permute.xlu0 %559
        %561 = vrot.lane.b32.xlu0 %v408, 32
        %v562 = vpop.permute.xlu0 %561
        %563 = vrot.lane.b32.xlu0 %v479, 32
        %v564 = vpop.permute.xlu0 %563
        %565 = vrot.lane.b32.xlu0 %v550, 32
        %v566 = vpop.permute.xlu0 %565
        %vm567 = vcmask 31744
        %v569 = vsel %vm567, %v239, %v369
        %v571 = vsel %vm567, %v240, %v371
        %v573 = vsel %vm567, %v241, %v373
        %v575 = vsel %vm567, %v242, %v375
        %v577 = vsel %vm567, %v243, %v377
        %v579 = vsel %vm567, %v244, %v379
        %v581 = vsel %vm567, %v245, %v381
        %v583 = vsel %vm567, %v246, %v383
        %vm584 = vcmask 64512
        %v586 = vsel %vm584, %v569, %v410
        %v588 = vsel %vm584, %v571, %v412
        %v590 = vsel %vm584, %v573, %v414
        %v592 = vsel %vm584, %v575, %v416
        %v594 = vsel %vm584, %v577, %v418
        %v596 = vsel %vm584, %v579, %v420
        %v598 = vsel %vm584, %v581, %v422
        %v600 = vsel %vm584, %v583, %v424
        %vm601 = vcmask 97280
        %v603 = vsel %vm601, %v586, %v431
        %v605 = vsel %vm601, %v588, %v433
        %v607 = vsel %vm601, %v590, %v435
        %v609 = vsel %vm601, %v592, %v437
        %v611 = vsel %vm601, %v594, %v439
        %v613 = vsel %vm601, %v596, %v441
        %v615 = vsel %vm601, %v598, %v443
        %v617 = vsel %vm601, %v600, %v445
        %vm618 = vcmask 130048
        %v620 = vsel %vm618, %v603, %v462
        %v622 = vsel %vm618, %v605, %v464
        %v624 = vsel %vm618, %v607, %v466
        %v626 = vsel %vm618, %v609, %v468
        %v628 = vsel %vm618, %v611, %v470
        %v630 = vsel %vm618, %v613, %v472
        %v632 = vsel %vm618, %v615, %v474
        %v634 = vsel %vm618, %v617, %v476
        %vm635 = vcmask 162816
        %v637 = vsel %vm635, %v620, %v481
        %v639 = vsel %vm635, %v622, %v483
        %v641 = vsel %vm635, %v624, %v485
        %v643 = vsel %vm635, %v626, %v487
        %v645 = vsel %vm635, %v628, %v489
        %v647 = vsel %vm635, %v630, %v491
        %v649 = vsel %vm635, %v632, %v493
        %v651 = vsel %vm635, %v634, %v495
        %vm652 = vcmask 195584
        %v654 = vsel %vm652, %v637, %v502
        %v656 = vsel %vm652, %v639, %v504
        %v658 = vsel %vm652, %v641, %v506
        %v660 = vsel %vm652, %v643, %v508
        %v662 = vsel %vm652, %v645, %v510
        %v664 = vsel %vm652, %v647, %v512
        %v666 = vsel %vm652, %v649, %v514
        %v668 = vsel %vm652, %v651, %v516
        %vm669 = vcmask 228352
        %v671 = vsel %vm669, %v654, %v533
        %v673 = vsel %vm669, %v656, %v535
        %v675 = vsel %vm669, %v658, %v537
        %v677 = vsel %vm669, %v660, %v539
        %v679 = vsel %vm669, %v662, %v541
        %v681 = vsel %vm669, %v664, %v543
        %v683 = vsel %vm669, %v666, %v545
        %v685 = vsel %vm669, %v668, %v547
        %vm686 = vcmask 261120
        %v688 = vsel %vm686, %v671, %v552
        %v690 = vsel %vm686, %v673, %v554
        %v692 = vsel %vm686, %v675, %v556
        %v694 = vsel %vm686, %v677, %v558
        %v696 = vsel %vm686, %v679, %v560
        %v698 = vsel %vm686, %v681, %v562
        %v700 = vsel %vm686, %v683, %v564
        %v702 = vsel %vm686, %v685, %v566
        %v708 = vunpack.c.l.b16 %v172
        %v709 = vunpack.c.l.b16 %v173
        %v710 = vunpack.c.l.b16 %v174
        %v711 = vunpack.c.l.b16 %v175
        %v712 = vunpack.c.l.b16 %v176
        %v713 = vpack.c.b16 %v709, %v708
        %v714 = vpack.c.b16 %v711, %v710
        %v715 = vpack.c.b16 %v712, %v712
        %vm718 = vcmask 293888
        %v719 = vsel %vm718, %v688, 0
        %v721 = vsel %vm718, %v690, 0
        %v723 = vsel %vm718, %v692, 0
        %v725 = vsel %vm718, %v694, 0
        %v727 = vsel %vm718, %v696, 0
        %v729 = vsel %vm718, %v698, 0
        %v731 = vsel %vm718, %v700, 0
        %v733 = vsel %vm718, %v702, 0
        %vm735 = vcmask 1041408
        %v737 = vsel %vm735, %v715, 0
        %739 = vmatprep.subr.bf16.mxu0 0
        %740 = vmatpush1.bf16.msra.mxu0 %v713
        %741 = vmatprep.subr.bf16.mxu0 0
        %742 = vmatpush1.bf16.msra.mxu0 %v714
        %743 = vmatprep.subr.bf16.mxu0 0
        %744 = vmatpush1.bf16.msra.mxu0 %v737
        %745 = vmatprep.subr.bf16.mxu0 0
        %746 = vmatpush1.bf16.msra.mxu0 0
        %747 = vmatprep.subr.bf16.mxu0 0
        %748 = vmatpush1.bf16.msra.mxu0 0
        %749 = vmatprep.subr.bf16.mxu0 0
        %750 = vmatpush1.bf16.msra.mxu0 0
        %751 = vmatprep.subr.bf16.mxu0 0
        %752 = vmatpush1.bf16.msra.mxu0 0
        %753 = vmatprep.subr.bf16.mxu0 0
        %754 = vmatpush1.bf16.msra.mxu0 0
        %755 = vmatprep.subr.bf16.mxu0 0
        %756 = vmatpush1.bf16.msra.mxu0 0
        %757 = vmatprep.subr.bf16.mxu0 0
        %758 = vmatpush1.bf16.msra.mxu0 0
        %759 = vmatprep.subr.bf16.mxu0 0
        %760 = vmatpush1.bf16.msra.mxu0 0
        %761 = vmatprep.subr.bf16.mxu0 0
        %762 = vmatpush1.bf16.msra.mxu0 0
        %763 = vmatprep.subr.bf16.mxu0 0
        %764 = vmatpush1.bf16.msra.mxu0 0
        %765 = vmatprep.subr.bf16.mxu0 0
        %766 = vmatpush1.bf16.msra.mxu0 0
        %767 = vmatprep.subr.bf16.mxu0 0
        %768 = vmatpush1.bf16.msra.mxu0 0
        %769 = vmatprep.subr.bf16.mxu0 0
        %770 = vmatpush1.bf16.msra.mxu0 0
        %771 = vmatprep.mubr.bf16.mxu0 0
        %772 = vmatmul.mubr.bf16.gmra.mrb[0].mxu0 %v719
        %v773 = vpop.f32.mrb[0].mxu0
        %v774 = vadd.f32 0.0, %v773
        %v775 = vpop.f32.mrb[0].mxu0
        %v776 = vpop.f32.mrb[0].mxu0
        %v777 = vadd.f32 0.0, %v776
        %v778 = vpop.f32.mrb[0].mxu0
        %779 = vmatprep.mubr.bf16.mxu0 0
        %780 = vmatmul.mubr.bf16.gmra.mrb[0].mxu0 %v721
        %v781 = vpop.f32.mrb[0].mxu0
        %v782 = vadd.f32 0.0, %v781
        %v783 = vpop.f32.mrb[0].mxu0
        %v784 = vpop.f32.mrb[0].mxu0
        %v785 = vadd.f32 0.0, %v784
        %v786 = vpop.f32.mrb[0].mxu0
        %787 = vmatprep.mubr.bf16.mxu0 0
        %788 = vmatmul.mubr.bf16.gmra.mrb[0].mxu0 %v723
        %v789 = vpop.f32.mrb[0].mxu0
        %v790 = vadd.f32 0.0, %v789
        %v791 = vpop.f32.mrb[0].mxu0
        %v792 = vpop.f32.mrb[0].mxu0
        %v793 = vadd.f32 0.0, %v792
        %v794 = vpop.f32.mrb[0].mxu0
        %795 = vmatprep.mubr.bf16.mxu0 0
        %796 = vmatmul.mubr.bf16.gmra.mrb[0].mxu0 %v725
        %v797 = vpop.f32.mrb[0].mxu0
        %v798 = vadd.f32 0.0, %v797
        %v799 = vpop.f32.mrb[0].mxu0
        %v800 = vpop.f32.mrb[0].mxu0
        %v801 = vadd.f32 0.0, %v800
        %v802 = vpop.f32.mrb[0].mxu0
        %803 = vmatprep.mubr.bf16.mxu0 0
        %804 = vmatmul.mubr.bf16.gmra.mrb[0].mxu0 %v727
        %v805 = vpop.f32.mrb[0].mxu0
        %v806 = vadd.f32 0.0, %v805
        %v807 = vpop.f32.mrb[0].mxu0
        %v808 = vpop.f32.mrb[0].mxu0
        %v809 = vadd.f32 0.0, %v808
        %v810 = vpop.f32.mrb[0].mxu0
        %811 = vmatprep.mubr.bf16.mxu0 0
        %812 = vmatmul.mubr.bf16.gmra.mrb[0].mxu0 %v729
        %v813 = vpop.f32.mrb[0].mxu0
        %v814 = vadd.f32 0.0, %v813
        %v815 = vpop.f32.mrb[0].mxu0
        %v816 = vpop.f32.mrb[0].mxu0
        %v817 = vadd.f32 0.0, %v816
        %v818 = vpop.f32.mrb[0].mxu0
        %819 = vmatprep.mubr.bf16.mxu0 0
        %820 = vmatmul.mubr.bf16.gmra.mrb[0].mxu0 %v731
        %v821 = vpop.f32.mrb[0].mxu0
        %v822 = vadd.f32 0.0, %v821
        %v823 = vpop.f32.mrb[0].mxu0
        %v824 = vpop.f32.mrb[0].mxu0
        %v825 = vadd.f32 0.0, %v824
        %v826 = vpop.f32.mrb[0].mxu0
        %827 = vmatprep.mubr.bf16.mxu0 0
        %828 = vmatmul.mubr.bf16.gmra.mrb[0].mxu0 %v733
        %v829 = vpop.f32.mrb[0].mxu0
        %v830 = vadd.f32 0.0, %v829
        %v831 = vpop.f32.mrb[0].mxu0
        %v832 = vpop.f32.mrb[0].mxu0
        %v833 = vadd.f32 0.0, %v832
        %v834 = vpop.f32.mrb[0].mxu0
        %835 = vdwg.mxu0
        %836 = vst [vmem:[%s160] sm:$0xff] %v774
        %837 = vst [vmem:[%s160 + $0x8] sm:$0xff] %v777
        %838 = vst [vmem:[%s160 + $0x10] sm:$0xff] %v782
        %839 = vst [vmem:[%s160 + $0x18] sm:$0xff] %v785
        %840 = vst [vmem:[%s160 + $0x20] sm:$0xff] %v790
        %841 = vst [vmem:[%s160 + $0x28] sm:$0xff] %v793
        %842 = vst [vmem:[%s160 + $0x30] sm:$0xff] %v798
        %843 = vst [vmem:[%s160 + $0x38] sm:$0xff] %v801
        %844 = vst [vmem:[%s160 + $0x40] sm:$0xff] %v806
        %845 = vst [vmem:[%s160 + $0x48] sm:$0xff] %v809
        %846 = vst [vmem:[%s160 + $0x50] sm:$0xff] %v814
        %847 = vst [vmem:[%s160 + $0x58] sm:$0xff] %v817
        %848 = vst [vmem:[%s160 + $0x60] sm:$0xff] %v822
        %849 = vst [vmem:[%s160 + $0x68] sm:$0xff] %v825
        %850 = vst [vmem:[%s160 + $0x70] sm:$0xff] %v830
        %851 = vst [vmem:[%s160 + $0x78] sm:$0xff] %v833
        %s852 = sand.u32 %s87, 1
        %s853 = scalar_lea.sflag [#allocation3], %s852
        %s854 = sand.u32 %s87, 1
        %s855 = smul.addr %s854, 128
        %s856 = scalar_lea.vmem [#allocation2], %s855
        // Predicated region
        $region29: #{tpu_custom_call.1} parent=27 // pred_check
          %p857 = pneg %p97
        $region30: #{tpu_custom_call.1} parent=27 // pred_check_branch
          %859 = sbr.rel (%p857) target = $region32
        $region31: #{tpu_custom_call.1} parent=27 // pred_region
          %s860 = smul.u32 8, %s21
          %s862 = ssub.s32 2048, 2048
          %863 = vsyncadd %s853, %s862
          %s864 = smul.addr %s860, 2
          %s865 = smul.addr %s20, 32
          %s866 = sadd.s32 %s864, %s865
          %s867 = smul.addr %s866, 128
          %s868 = scalar_lea.hbm %s2, %s867
          %s869 = sshll.u32 %s856, 4
          %s870 = int_to_ptr.vmem [resolvable:$true] %s869
          %875 = dma.vmem_to_hbm [thread:$0]  %s870, 2048, %s868, %s853, 128, 128, 8
        $region32: #{tpu_custom_call.1} parent=27 // pred_fallthru
          _
      $region28: #{tpu_custom_call.1} parent=5 // pred_fallthru
        _
      %p876 = scmp.le.s32.totalorder 2, %s11
      // Predicated region
      $region33: #{tpu_custom_call.1} parent=5 // pred_check
        %p877 = pneg %p876
      $region34: #{tpu_custom_call.1} parent=5 // pred_check_branch
        %879 = sbr.rel (%p877) target = $region36
      $region35: #{tpu_custom_call.1} parent=5 // pred_region
        %s880 = ssub.s32 %s11, 2
        // Predicated region
        $region37: #{tpu_custom_call.1} parent=35 // pred_check
          %p881 = pneg %p103
        $region38: #{tpu_custom_call.1} parent=35 // pred_check_branch
          %883 = sbr.rel (%p881) target = $region40
        $region39: #{tpu_custom_call.1} parent=35 // pred_region
          %s884 = sand.u32 %s88, 1
          %s885 = scalar_lea.sflag [#allocation3], %s884
          %s886 = sand.u32 %s88, 1
          %s887 = smul.addr %s886, 128
          %s888 = scalar_lea.vmem [#allocation2], %s887
          %889 = dma.done %s885, 2048
        $region40: #{tpu_custom_call.1} parent=35 // pred_fallthru
          _
      $region36: #{tpu_custom_call.1} parent=5 // pred_fallthru
        _
    $region6: #{tpu_custom_call.1} parent=1 // loop_footer
      %s15 = sadd.s32 1, %s11
    $region7: #{tpu_custom_call.1} parent=1 // loop_footer_branch
      %10 = sbr.rel target = $region3
    $region8: #{tpu_custom_call.1} parent=1 // loop_exit
      _
    %890 = vsyncpa [#allocation3], 1
    %s891 = scalar_lea.sflag [#allocation3], 1
    %892 = vsyncpa %s891, 1

</llo_original>
